<compile_context>
chip_gen: v7x
topology: tpu7x:2x2x1
jax: 0.10.0
libtpu: 0.0.40
codegen_flags: <defaults>
</compile_context>

<pallas_src>
import functools
import math

import jax
import jax.numpy as jnp
from jax.experimental import pallas as pl
from jax.experimental.pallas import tpu as pltpu

_MIB = 1024 * 1024


def _physical_vmem_bytes() -> int:
    """Per-core physical VMEM; conservative default if the query is unavailable."""
    try:
        return int(pltpu.get_tpu_info().vmem_capacity_bytes)
    except Exception:  # pragma: no cover - older jax / non-TPU tracing
        return 64 * _MIB  # v7x per-TensorCore size (the smallest of the targets)


# --------------------------------------------------------------------------------------
# Fused single-pass kernel: sum -> gate -> multiply, per-batch slab resident in VMEM.
# --------------------------------------------------------------------------------------
def _fused_kernel(w_ref, x_ref, o_ref, *, g, C, n_rows, k_size):
    # f32-accumulated per-lane sum over the folded row axis (reads the slab from VMEM).
    s = jnp.sum(x_ref[0].astype(jnp.float32), axis=0, keepdims=True)      # (1, L)

    # Fold the g channel groups back onto C lanes -> per-channel mean (1, C).
    mean = s[:, 0:C]
    for j in range(1, g):
        mean = mean + s[:, j * C:(j + 1) * C]
    mean = mean * (1.0 / n_rows)

    # k-tap channel conv (cross-correlation with zero padding), weights from SMEM scalars.
    pad = (k_size - 1) // 2
    if pad > 0:
        z = jnp.zeros((1, pad), jnp.float32)
        mp = jnp.concatenate([z, mean, z], axis=1)                        # (1, C + 2*pad)
    else:
        mp = mean
    conv = w_ref[0] * mp[:, 0:C]
    for j in range(1, k_size):
        conv = conv + w_ref[j] * mp[:, j:j + C]

    gate_c = 1.0 / (1.0 + jnp.exp(-conv))                                 # sigmoid, (1, C)
    gate = jnp.tile(gate_c, (1, g)).astype(o_ref.dtype)                   # folded, (1, L)

    # Broadcast multiply (second read of the slab) and lane-dense store.
    o_ref[0] = x_ref[0] * gate


# --------------------------------------------------------------------------------------
# Two-pass fallback kernels (large slabs).
# --------------------------------------------------------------------------------------
def _sum_kernel(x_ref, sum_ref):
    """Accumulate per-lane (folded-channel) sums over the row axis (f32 accumulator)."""
    @pl.when(pl.program_id(1) == 0)
    def _():
        sum_ref[...] = jnp.zeros_like(sum_ref)
    sum_ref[0] += jnp.sum(x_ref[0].astype(jnp.float32), axis=0, keepdims=True)


def _apply_kernel(x_ref, gate_ref, o_ref):
    """out = x * gate (gate already in x.dtype, broadcast over rows)."""
    o_ref[0] = x_ref[0] * gate_ref[0]


# --------------------------------------------------------------------------------------
# Wrapper
# --------------------------------------------------------------------------------------
def eca_layer_1d(x, conv_weight, k_size: int = 3):
    """x: (B, N, C); conv_weight: Conv1d(1, 1, k, bias=False) weight (any shape with k elems)."""
    B, N, C = x.shape
    itemsize = jnp.dtype(x.dtype).itemsize
    w = conv_weight.reshape(-1).astype(jnp.float32)                       # (k,)

    # --- lane-dense folded layout: (B, N, C) -> (B, R, L), L = g*C a multiple of 128 ---
    g = 128 // math.gcd(C, 128)            # smallest g with (g*C) % 128 == 0
    L = g * C
    R = -(-N // g)                         # ceil(N / g)  (zero-row pad if needed)
    row_bytes = L * itemsize

    phys_vmem = _physical_vmem_bytes()
    vmem_limit = int(phys_vmem // 2)       # v7x: ~32 MiB, v5e/v6e: ~64 MiB

    slab_bytes = R * row_bytes
    # Fused footprint: 2x input + 2x output double buffers + headroom for f32 temporaries.
    fused_ok = 6 * slab_bytes + 2 * _MIB <= vmem_limit

    if fused_ok:
        R_total = R
        tr_sum = tr_app = R                # unused in fused path
    else:
        # Asymmetric budgets: the reduction kernel only double-buffers its input
        # (output accumulator is a tiny (1,1,L) block), so it gets a larger tile.
        budget_app = 2 * _MIB
        budget_sum = 4 * _MIB
        cap_app = max(1, budget_app // row_bytes)
        cap_sum = max(1, budget_sum // row_bytes)
        if R <= cap_app:
            tr_app = tr_sum = R
            R_total = R
        else:
            # Sublane-aligned multiply tile; pad the row axis up to a multiple of it.
            tr_app = max(8, (min(cap_app, R) // 8) * 8)
            R_total = -(-R // tr_app) * tr_app
            # Largest multiple of tr_app that divides R_total and fits the sum budget.
            tr_sum = tr_app
            d = 2
            while d * tr_app <= cap_sum:
                if (R_total // tr_app) % d == 0:
                    tr_sum = d * tr_app
                d += 1

    # One zero-row pad covers both the channel fold and row-tile alignment.
    # Zero rows do not affect the sum (we divide by the true N) and are sliced off at the end.
    N_total = R_total * g
    if N_total != N:
        x = jnp.pad(x, ((0, 0), (0, N_total - N), (0, 0)))
    x2 = x.reshape(B, R_total, L)                                          # contiguous: free

    if fused_ok:
        out2 = pl.pallas_call(
            functools.partial(_fused_kernel, g=g, C=C, n_rows=N, k_size=k_size),
            out_shape=jax.ShapeDtypeStruct((B, R_total, L), x.dtype),
            grid=(B,),
            in_specs=[pl.BlockSpec(memory_space=pltpu.MemorySpace.SMEM),   # conv weights
                      pl.BlockSpec((1, R_total, L), lambda b: (b, 0, 0))],
            out_specs=pl.BlockSpec((1, R_total, L), lambda b: (b, 0, 0)),
            compiler_params=pltpu.CompilerParams(
                dimension_semantics=("parallel",),
                vmem_limit_bytes=vmem_limit),
            cost_estimate=pl.CostEstimate(
                flops=2 * B * N_total * C, transcendentals=B * C,
                bytes_accessed=2 * B * N_total * C * itemsize),
        )(w, x2)
    else:
        # ---- pass 1: per-lane f32 sums over rows (reads x once) ----
        sums = pl.pallas_call(
            _sum_kernel,
            out_shape=jax.ShapeDtypeStruct((B, 1, L), jnp.float32),
            grid=(B, R_total // tr_sum),
            in_specs=[pl.BlockSpec((1, tr_sum, L), lambda b, n: (b, n, 0))],
            out_specs=pl.BlockSpec((1, 1, L), lambda b, n: (b, 0, 0)),      # resident acc
            compiler_params=pltpu.CompilerParams(
                dimension_semantics=("parallel", "arbitrary"),
                vmem_limit_bytes=vmem_limit),
            cost_estimate=pl.CostEstimate(
                flops=B * N_total * C, transcendentals=0,
                bytes_accessed=B * N_total * C * itemsize + B * L * 4),
        )(x2)

        # ---- tiny (B, C) gate in plain JAX (negligible work, off the hot path) ----
        mean = sums.reshape(B, g, C).sum(axis=1) * (1.0 / N)               # (B, C) f32
        pad = (k_size - 1) // 2
        mp = jnp.pad(mean, ((0, 0), (pad, pad)))
        conv = sum(w[j] * mp[:, j:j + C] for j in range(k_size))           # cross-correlation
        gate = jax.nn.sigmoid(conv).astype(x.dtype)                        # pre-cast to x.dtype
        gate2 = jnp.tile(gate, (1, g)).reshape(B, 1, L)                    # folded layout

        # ---- pass 2: lane-dense tiled broadcast multiply ----
        out2 = pl.pallas_call(
            _apply_kernel,
            out_shape=jax.ShapeDtypeStruct((B, R_total, L), x.dtype),
            grid=(B, R_total // tr_app),
            in_specs=[pl.BlockSpec((1, tr_app, L), lambda b, r: (b, r, 0)),
                      pl.BlockSpec((1, 1, L), lambda b, r: (b, 0, 0))],
            out_specs=pl.BlockSpec((1, tr_app, L), lambda b, r: (b, r, 0)),
            compiler_params=pltpu.CompilerParams(
                dimension_semantics=("parallel", "parallel"),
                vmem_limit_bytes=vmem_limit),
            cost_estimate=pl.CostEstimate(
                flops=B * N_total * C, transcendentals=0,
                bytes_accessed=2 * B * N_total * C * itemsize + B * L * itemsize),
        )(x2, gate2)

    out = out2.reshape(B, N_total, C)
    if N_total != N:
        out = out[:, :N, :]
    return out


if __name__ == "__main__":
    key = jax.random.PRNGKey(0)
    kx, kw = jax.random.split(key)

    B, N, C = 2, 8, 32        # batch, sequence, channels
    k_size = 3

    x = jax.random.normal(kx, (B, N, C), dtype=jnp.float32)
    # Deterministic stand-in for the Conv1d(1, 1, k) weight (shape (1,1,k) -> (k,)).
    w = jax.random.normal(kw, (k_size,), dtype=jnp.float32) * 0.5

    out = jax.block_until_ready(eca_layer_1d(x, w, k_size=k_size))

    # pure-JAX reference for correctness
    pad = (k_size - 1) // 2
    y = jnp.mean(x, axis=1)                                   # (B, C)
    yp = jnp.pad(y, ((0, 0), (pad, pad)))
    conv = sum(w[j] * yp[:, j:j + C] for j in range(k_size))  # (B, C), cross-correlation
    ref = x * jax.nn.sigmoid(conv)[:, None, :]
    assert out.shape == ref.shape
    assert jnp.allclose(out, ref, atol=1e-5, rtol=1e-5), "mismatch vs reference"

    print("KERNEL_OK")
</pallas_src>

<mosaic_0001>
module attributes {stable_mosaic.version = 11 : i64} {
  func.func @_fused_kernel(%arg0: i32, %arg1: memref<3xf32, #tpu.memory_space<smem>>, %arg2: memref<1x2x128xf32, #tpu.memory_space<vmem>>, %arg3: memref<1x2x128xf32, #tpu.memory_space<vmem>>) attributes {dimension_semantics = [#tpu.dimension_semantics<parallel>], iteration_bounds = array<i64: 2>, scalar_prefetch = 0 : i64, scratch_operands = 0 : i64, tpu.core_type = #tpu.core_type<tc>, window_params = [{transform_indices = @transform_0, window_bounds = array<i64: 3>}, {transform_indices = @transform_1, window_bounds = array<i64: 1, 2, 128>}, {transform_indices = @transform_2, window_bounds = array<i64: 1, 2, 128>}]} {
    %c0 = arith.constant 0 : index
    %c0_0 = arith.constant 0 : index
    %c0_1 = arith.constant 0 : index
    %0 = vector.load %arg2[%c0, %c0_0, %c0_1] : memref<1x2x128xf32, #tpu.memory_space<vmem>>, vector<1x2x128xf32>
    %1 = vector.shape_cast %0 : vector<1x2x128xf32> to vector<2x128xf32>
    %cst = arith.constant dense<0.000000e+00> : vector<128xf32>
    %2 = vector.multi_reduction <add>, %1, %cst [0] : vector<2x128xf32> to vector<128xf32>
    %3 = vector.shape_cast %2 : vector<128xf32> to vector<1x128xf32>
    %4 = vector.extract_strided_slice %3 {offsets = [0, 0], sizes = [1, 32], strides = [1, 1]} : vector<1x128xf32> to vector<1x32xf32>
    %5 = vector.extract_strided_slice %3 {offsets = [0, 32], sizes = [1, 32], strides = [1, 1]} : vector<1x128xf32> to vector<1x32xf32>
    %6 = arith.addf %4, %5 : vector<1x32xf32>
    %7 = vector.extract_strided_slice %3 {offsets = [0, 64], sizes = [1, 32], strides = [1, 1]} : vector<1x128xf32> to vector<1x32xf32>
    %8 = arith.addf %6, %7 : vector<1x32xf32>
    %9 = vector.extract_strided_slice %3 {offsets = [0, 96], sizes = [1, 32], strides = [1, 1]} : vector<1x128xf32> to vector<1x32xf32>
    %10 = arith.addf %8, %9 : vector<1x32xf32>
    %cst_2 = arith.constant 1.250000e-01 : f32
    %11 = vector.broadcast %cst_2 : f32 to vector<1x32xf32>
    %12 = arith.mulf %10, %11 : vector<1x32xf32>
    %cst_3 = arith.constant 0.000000e+00 : f32
    %13 = vector.broadcast %cst_3 : f32 to vector<1x1xf32>
    %14 = tpu.concatenate %13, %12, %13 in 1 : vector<1x1xf32>, vector<1x32xf32>, vector<1x1xf32> -> vector<1x34xf32>
    %c0_4 = arith.constant 0 : index
    %15 = memref.load %arg1[%c0_4] : memref<3xf32, #tpu.memory_space<smem>>
    %16 = vector.extract_strided_slice %14 {offsets = [0, 0], sizes = [1, 32], strides = [1, 1]} : vector<1x34xf32> to vector<1x32xf32>
    %17 = vector.broadcast %15 : f32 to vector<1x32xf32>
    %18 = arith.mulf %17, %16 : vector<1x32xf32>
    %c1 = arith.constant 1 : index
    %19 = memref.load %arg1[%c1] : memref<3xf32, #tpu.memory_space<smem>>
    %20 = vector.extract_strided_slice %14 {offsets = [0, 1], sizes = [1, 32], strides = [1, 1]} : vector<1x34xf32> to vector<1x32xf32>
    %21 = vector.broadcast %19 : f32 to vector<1x32xf32>
    %22 = arith.mulf %21, %20 : vector<1x32xf32>
    %23 = arith.addf %18, %22 : vector<1x32xf32>
    %c2 = arith.constant 2 : index
    %24 = memref.load %arg1[%c2] : memref<3xf32, #tpu.memory_space<smem>>
    %25 = vector.extract_strided_slice %14 {offsets = [0, 2], sizes = [1, 32], strides = [1, 1]} : vector<1x34xf32> to vector<1x32xf32>
    %26 = vector.broadcast %24 : f32 to vector<1x32xf32>
    %27 = arith.mulf %26, %25 : vector<1x32xf32>
    %28 = arith.addf %23, %27 : vector<1x32xf32>
    %cst_5 = arith.constant 0.000000e+00 : f32
    %29 = vector.broadcast %cst_5 : f32 to vector<1x32xf32>
    %30 = arith.subf %29, %28 : vector<1x32xf32>
    %31 = math.exp %30 : vector<1x32xf32>
    %cst_6 = arith.constant 1.000000e+00 : f32
    %32 = vector.broadcast %cst_6 : f32 to vector<1x32xf32>
    %33 = arith.addf %32, %31 : vector<1x32xf32>
    %cst_7 = arith.constant 1.000000e+00 : f32
    %34 = vector.broadcast %cst_7 : f32 to vector<1x32xf32>
    %35 = arith.divf %34, %33 : vector<1x32xf32>
    %36 = tpu.concatenate %35, %35, %35, %35 in 1 : vector<1x32xf32>, vector<1x32xf32>, vector<1x32xf32>, vector<1x32xf32> -> vector<1x128xf32>
    %c0_8 = arith.constant 0 : index
    %c0_9 = arith.constant 0 : index
    %c0_10 = arith.constant 0 : index
    %37 = vector.load %arg2[%c0_8, %c0_9, %c0_10] : memref<1x2x128xf32, #tpu.memory_space<vmem>>, vector<1x2x128xf32>
    %38 = vector.shape_cast %37 : vector<1x2x128xf32> to vector<2x128xf32>
    %39 = vector.broadcast %36 : vector<1x128xf32> to vector<2x128xf32>
    %40 = arith.mulf %38, %39 : vector<2x128xf32>
    %c0_11 = arith.constant 0 : index
    %c0_12 = arith.constant 0 : index
    %c0_13 = arith.constant 0 : index
    %41 = vector.load %arg3[%c0_11, %c0_12, %c0_13] : memref<1x2x128xf32, #tpu.memory_space<vmem>>, vector<1x2x128xf32>
    %42 = vector.shape_cast %41 : vector<1x2x128xf32> to vector<2x128xf32>
    %43 = vector.shape_cast %40 : vector<2x128xf32> to vector<1x2x128xf32>
    tpu.vector_store %arg3[%c0_11, %c0_12, %c0_13], %43 {strides = array<i32>} : memref<1x2x128xf32, #tpu.memory_space<vmem>>, vector<1x2x128xf32>,
    return
  }
  func.func @transform_0(%arg0: i32) -> i32 {
    %c0_i32 = arith.constant 0 : i32
    %c0_i32_0 = arith.constant 0 : i32
    return %c0_i32 : i32
  }
  func.func @transform_1(%arg0: i32) -> (i32, i32, i32) {
    %c0_i32 = arith.constant 0 : i32
    %c0_i32_0 = arith.constant 0 : i32
    %c0_i32_1 = arith.constant 0 : i32
    return %arg0, %c0_i32, %c0_i32_0 : i32, i32, i32
  }
  func.func @transform_2(%arg0: i32) -> (i32, i32, i32) {
    %c0_i32 = arith.constant 0 : i32
    %c0_i32_0 = arith.constant 0 : i32
    %c0_i32_1 = arith.constant 0 : i32
    return %arg0, %c0_i32, %c0_i32_0 : i32, i32, i32
  }
}

</mosaic_0001>

<llo_original>
// kernel: tpu_custom_call.1
$region0: #{tpu_custom_call.1}
  #allocation0 [shape = 'u32[]', space=smem, size = 0x4, offset = 0x4, fixed_abs, tag = 'smem constant byte address 0x4 - core index']
  #allocation1 [shape = 'u32[144,128]{1,0:T(1,128)}', space=vmem, size = 0x12000, scoped, tag = 'internal scratch']
  %s0 = inlined_call_operand.hbm [shape: f32[3], index: 0, kind: input, shape index: {}]
  %s1 = inlined_call_operand.hbm [shape: f32[2,2,128], index: 1, kind: input, shape index: {}]
  %s2 = inlined_call_operand.hbm [shape: f32[2,2,128], index: 2, kind: output, shape index: {}]
  %s3 = sld [smem:[#allocation0]]
  $region49: #{tpu_custom_call.1} parent=0
    _
  %s5 = ssub.s32 1, %s3
  %s6 = scalar_select 0, %s5, %s3
  $region1: #{tpu_custom_call.1} parent=0
    #allocation2 [shape = 'u8[512]{0}', space=smem, size = 0x200, scoped, tag = 'input window, operand 0, single buffered']
    #allocation3 [shape = 's32[2]{0}', space=sflag, size = 0x8, scoped, tag = 'scoped memory for tpu_custom_call.1']
    #allocation4 [shape = 's32[2]{0}', space=sflag, size = 0x8, scoped, tag = 'scoped memory for tpu_custom_call.1']
    #allocation5 [shape = 's32[2]{0}', space=sflag, size = 0x8, scoped, tag = 'scoped memory for tpu_custom_call.1']
    #allocation6 [shape = 'u8[2048]{0}', space=vmem, size = 0x800, scoped, tag = 'input window, operand 1']
    #allocation7 [shape = 'u8[2048]{0}', space=vmem, size = 0x800, scoped, tag = 'output window, operand 0']
    %7 = vsyncpa [#allocation5], 0
    %8 = vsyncpa [#allocation3], 0
    %s9 = scalar_lea.sflag [#allocation3], 1
    %10 = vsyncpa %s9, 0
    %11 = vsyncpa [#allocation4], 0
    %s12 = scalar_lea.sflag [#allocation4], 1
    %13 = vsyncpa %s12, 0
    loop: start=0, step=1, limit=4
    $region2: #{tpu_custom_call.1} parent=1 // loop_pre_header
      _
    $region3: #{tpu_custom_call.1} parent=1 // loop_header
      %s15 = sphi 0, %s19
      %p16 = scmp.ge.s32.totalorder %s15, 4
      %s23 = sphi 0, %s23
      %s25 = sphi 0, %s23
      %s26 = sphi 0, %s25
      %s40 = sphi 0, %s26
      %s46 = sphi 0, %s48
      %s49 = sphi 0, %s46
      %s50 = sphi 0, %s49
      %s66 = sphi 0, %s50
      %s72 = sphi 0, %s74
      %s75 = sphi 0, %s72
      %s76 = sphi 0, %s75
      %s92 = sphi 0, %s76
    $region4: #{tpu_custom_call.1} parent=1 // loop_header_branch
      %18 = sbr.rel (%p16) target = $region8
    $region5: #{tpu_custom_call.1} parent=1 // loop_body
      %s20 = ssub.s32 %s15, 1
      %s21 = ssub.s32 %s15, 2
      %s22 = sadd.s32 %s15, 1
      %s24 = sadd.s32 %s23, 1
      %p27 = scmp.eq.s32.totalorder %s15, 1
      %p28 = scmp.ne.s32.totalorder %s23, %s25
      %p29 = scmp.eq.s32.totalorder %s15, 0
      %p30 = por %p28, %p29
      %p31 = scmp.ne.s32.totalorder %s23, %s25
      %p32 = scmp.eq.s32.totalorder %s20, 1
      %p33 = por %p31, %p32
      %p34 = scmp.ne.s32.totalorder %s25, %s26
      %p35 = scmp.eq.s32.totalorder %s20, 0
      %p36 = por %p34, %p35
      %p37 = scmp.ne.s32.totalorder %s25, %s26
      %p38 = scmp.eq.s32.totalorder %s21, 1
      %p39 = por %p37, %p38
      %p41 = scmp.ne.s32.totalorder %s26, %s40
      %p42 = scmp.eq.s32.totalorder %s21, 0
      %p43 = por %p41, %p42
      %s44 = ssub.s32 %s15, %s22
      %p45 = scmp.eq.s32.totalorder %s44, 0
      %s47 = sadd.s32 %s46, 1
      %s48 = scalar_select %p45, %s46, %s47
      %p51 = pneg %p45
      %p52 = scmp.eq.s32.totalorder %s15, 1
      %p53 = por %p51, %p52
      %p54 = scmp.ne.s32.totalorder %s46, %s49
      %p55 = scmp.eq.s32.totalorder %s15, 0
      %p56 = por %p54, %p55
      %p57 = scmp.ne.s32.totalorder %s46, %s49
      %p58 = scmp.eq.s32.totalorder %s20, 1
      %p59 = por %p57, %p58
      %p60 = scmp.ne.s32.totalorder %s49, %s50
      %p61 = scmp.eq.s32.totalorder %s20, 0
      %p62 = por %p60, %p61
      %p63 = scmp.ne.s32.totalorder %s49, %s50
      %p64 = scmp.eq.s32.totalorder %s21, 1
      %p65 = por %p63, %p64
      %p67 = scmp.ne.s32.totalorder %s50, %s66
      %p68 = scmp.eq.s32.totalorder %s21, 0
      %p69 = por %p67, %p68
      %s70 = ssub.s32 %s15, %s22
      %p71 = scmp.eq.s32.totalorder %s70, 0
      %s73 = sadd.s32 %s72, 1
      %s74 = scalar_select %p71, %s72, %s73
      %p77 = pneg %p71
      %p78 = scmp.eq.s32.totalorder %s15, 1
      %p79 = por %p77, %p78
      %p80 = scmp.ne.s32.totalorder %s72, %s75
      %p81 = scmp.eq.s32.totalorder %s15, 0
      %p82 = por %p80, %p81
      %p83 = scmp.ne.s32.totalorder %s72, %s75
      %p84 = scmp.eq.s32.totalorder %s20, 1
      %p85 = por %p83, %p84
      %p86 = scmp.ne.s32.totalorder %s75, %s76
      %p87 = scmp.eq.s32.totalorder %s20, 0
      %p88 = por %p86, %p87
      %p89 = scmp.ne.s32.totalorder %s75, %s76
      %p90 = scmp.eq.s32.totalorder %s21, 1
      %p91 = por %p89, %p90
      %p93 = scmp.ne.s32.totalorder %s76, %s92
      %p94 = scmp.eq.s32.totalorder %s21, 0
      %p95 = por %p93, %p94
      %p96 = scmp.le.s32.totalorder 1, %s15
      %p97 = scmp.lt.s32.totalorder %s15, 3
      %p98 = pnand %p96, %p97
      %p99 = pneg %p98
      // Predicated region
      $region9: #{tpu_custom_call.1} parent=5 // pred_check
        _
      $region10: #{tpu_custom_call.1} parent=5 // pred_check_branch
        %101 = sbr.rel (%p98) target = $region12
      $region11: #{tpu_custom_call.1} parent=5 // pred_region
        %s102 = ssub.s32 %s15, 1
        // Predicated region
        $region13: #{tpu_custom_call.1} parent=11 // pred_check
          %p103 = pneg %p36
        $region14: #{tpu_custom_call.1} parent=11 // pred_check_branch
          %105 = sbr.rel (%p103) target = $region16
        $region15: #{tpu_custom_call.1} parent=11 // pred_region
          %s107 = ssub.s32 16, 16
          %108 = vsyncadd [#allocation5], %s107
          %111 = dma.hbm_to_smem %s0, 16, [#allocation2], [#allocation5]
        $region16: #{tpu_custom_call.1} parent=11 // pred_fallthru
          _
      $region12: #{tpu_custom_call.1} parent=5 // pred_fallthru
        _
      %p112 = scmp.lt.s32.totalorder %s15, 2
      // Predicated region
      $region17: #{tpu_custom_call.1} parent=5 // pred_check
        %p113 = pneg %p112
      $region18: #{tpu_custom_call.1} parent=5 // pred_check_branch
        %115 = sbr.rel (%p113) target = $region20
      $region19: #{tpu_custom_call.1} parent=5 // pred_region
        // Predicated region
        $region21: #{tpu_custom_call.1} parent=19 // pred_check
          %p116 = pneg %p56
        $region22: #{tpu_custom_call.1} parent=19 // pred_check_branch
          %118 = sbr.rel (%p116) target = $region24
        $region23: #{tpu_custom_call.1} parent=19 // pred_region
          %s119 = sand.u32 %s46, 1
          %s120 = scalar_lea.sflag [#allocation3], %s119
          %s121 = sand.u32 %s46, 1
          %s122 = smul.addr %s121, 2
          %s123 = scalar_lea.vmem [#allocation6], %s122
          %s125 = ssub.s32 32, 32
          %126 = vsyncadd %s120, %s125
          %s127 = smul.addr %s15, 32
          %s128 = scalar_lea.hbm %s1, %s127
          %s130 = sshll.u32 %s123, 4
          %s131 = int_to_ptr.vmem [resolvable:$true] %s130
          %133 = dma.hbm_to_vmem [thread:$0]  %s128, 32, %s131, %s120
        $region24: #{tpu_custom_call.1} parent=19 // pred_fallthru
          _
      $region20: #{tpu_custom_call.1} parent=5 // pred_fallthru
        _
      %p134 = scmp.le.s32.totalorder 1, %s15
      %p135 = scmp.lt.s32.totalorder %s15, 3
      %p136 = pnand %p134, %p135
      %p137 = pneg %p136
      // Predicated region
      $region25: #{tpu_custom_call.1} parent=5 // pred_check
        _
      $region26: #{tpu_custom_call.1} parent=5 // pred_check_branch
        %139 = sbr.rel (%p136) target = $region28
      $region27: #{tpu_custom_call.1} parent=5 // pred_region
        %s140 = ssub.s32 %s15, 1
        // Predicated region
        $region29: #{tpu_custom_call.1} parent=27 // pred_check
          %p141 = pneg %p36
        $region30: #{tpu_custom_call.1} parent=27 // pred_check_branch
          %143 = sbr.rel (%p141) target = $region32
        $region31: #{tpu_custom_call.1} parent=27 // pred_region
          %144 = dma.done [#allocation5], 16
        $region32: #{tpu_custom_call.1} parent=27 // pred_fallthru
          _
        %s145 = sand.u32 %s49, 1
        %s146 = scalar_lea.sflag [#allocation3], %s145
        %s147 = sand.u32 %s49, 1
        %s148 = smul.addr %s147, 2
        %s149 = scalar_lea.vmem [#allocation6], %s148
        // Predicated region
        $region33: #{tpu_custom_call.1} parent=27 // pred_check
          %p150 = pneg %p62
        $region34: #{tpu_custom_call.1} parent=27 // pred_check_branch
          %152 = sbr.rel (%p150) target = $region36
        $region35: #{tpu_custom_call.1} parent=27 // pred_region
          %153 = dma.done %s146, 32
        $region36: #{tpu_custom_call.1} parent=27 // pred_fallthru
          _
        %154 = sfence
        %p155 = pneg %p36
        %p156 = pneg %p33
        %s157 = sand.u32 %s49, 1
        %s158 = scalar_lea.sflag [#allocation3], %s157
        %s159 = sand.u32 %s49, 1
        %s160 = smul.addr %s159, 2
        %s161 = scalar_lea.vmem [#allocation6], %s160
        %p162 = pneg %p62
        %p163 = pneg %p59
        %p164 = pneg %p88
        %p165 = pneg %p85
        %s166 = sand.u32 %s75, 1
        %s167 = scalar_lea.sflag [#allocation4], %s166
        %s168 = sand.u32 %s75, 1
        %s169 = smul.addr %s168, 2
        %s170 = scalar_lea.vmem [#allocation7], %s169
        %v171 = vld [vmem:[%s149] sm:$0x3]
        %vm172 = vcmask 1041408
        %v173 = vsel %vm172, %v171, 0.0
        %v174 = vrot.slane %v173, 4
        %v175 = vadd.f32 %v173, %v174
        %v176 = vrot.slane %v175, 2
        %v177 = vadd.f32 %v175, %v176
        %v178 = vrot.slane %v177, 1
        %v179 = vadd.f32 %v177, %v178
        %181 = vrot.lane.b32.xlu0 %v179, 96
        %v182 = vpop.permute.xlu0 %181
        %v184 = vadd.f32 %v179, %v182
        %185 = vrot.lane.b32.xlu0 %v179, 64
        %v186 = vpop.permute.xlu0 %185
        %v188 = vadd.f32 %v184, %v186
        %189 = vrot.lane.b32.xlu0 %v179, 32
        %v190 = vpop.permute.xlu0 %189
        %v192 = vadd.f32 %v188, %v190
        %v193 = vmul.f32 %v192, 0.125
        %195 = vrot.lane.b32.xlu0 %v193, 1
        %v196 = vpop.permute.xlu0 %195
        %vm198 = vcmask 7168
        %v199 = vsel %vm198, 0.0, %v196
        %vm200 = vcmask 269312
        %v201 = vsel %vm200, %v199, 0.0
        %s202 = sld [smem:[#allocation2]]
        %v203 = vstv %s202
        %v204 = vmul.f32 %v203, %v201
        %s205 = sld [smem:[#allocation2 + $0x1]]
        %v206 = vstv %s205
        %v207 = vmul.f32 %v206, %v201
        %209 = vrot.lane.b32.xlu0 %v207, 127
        %v210 = vpop.permute.xlu0 %209
        %v212 = vadd.f32 %v204, %v210
        %s213 = sld [smem:[#allocation2 + $0x2]]
        %v214 = vstv %s213
        %v215 = vmul.f32 %v214, %v201
        %217 = vrot.lane.b32.xlu0 %v215, 126
        %v218 = vpop.permute.xlu0 %217
        %v220 = vadd.f32 %v212, %v218
        %v221 = vsub.f32 0.0, %v220
        %v222 = vmul.f32 %v221, 1.442695
        %v223 = vpow.pop %v222
        %v224 = vadd.f32 %v223, 1.0
        %v225 = vrcp.pop %v224
        %v226 = vmul.f32 1.0, %v225
        %228 = vrot.lane.b32.xlu0 %v226, 32
        %v229 = vpop.permute.xlu0 %228
        %231 = vrot.lane.b32.xlu0 %v226, 64
        %v232 = vpop.permute.xlu0 %231
        %234 = vrot.lane.b32.xlu0 %v226, 96
        %v235 = vpop.permute.xlu0 %234
        %vm237 = vcmask 261120
        %v238 = vsel %vm237, %v226, %v229
        %vm239 = vcmask 523264
        %v240 = vsel %vm239, %v238, %v232
        %vm241 = vcmask 785408
        %v242 = vsel %vm241, %v240, %v235
        %v243 = vlaneseq
        %v244 = vshrl.u32 %v243, 7
        %v245 = vsub.s32 0, %v244
        %v246 = vrot.slane %v242, %v245
        %v247 = vmul.f32 %v171, %v246
        %248 = vst [vmem:[%s170] sm:$0x3] %v247
        %s249 = sand.u32 %s75, 1
        %s250 = scalar_lea.sflag [#allocation4], %s249
        %s251 = sand.u32 %s75, 1
        %s252 = smul.addr %s251, 2
        %s253 = scalar_lea.vmem [#allocation7], %s252
        // Predicated region
        $region37: #{tpu_custom_call.1} parent=27 // pred_check
          %p254 = pneg %p85
        $region38: #{tpu_custom_call.1} parent=27 // pred_check_branch
          %256 = sbr.rel (%p254) target = $region40
        $region39: #{tpu_custom_call.1} parent=27 // pred_region
          %s258 = ssub.s32 32, 32
          %259 = vsyncadd %s250, %s258
          %s260 = smul.addr %s20, 32
          %s261 = scalar_lea.hbm %s2, %s260
          %s263 = sshll.u32 %s253, 4
          %s264 = int_to_ptr.vmem [resolvable:$true] %s263
          %266 = dma.vmem_to_hbm [thread:$0]  %s264, 32, %s261, %s250
        $region40: #{tpu_custom_call.1} parent=27 // pred_fallthru
          _
      $region28: #{tpu_custom_call.1} parent=5 // pred_fallthru
        _
      %p267 = scmp.le.s32.totalorder 2, %s15
      // Predicated region
      $region41: #{tpu_custom_call.1} parent=5 // pred_check
        %p268 = pneg %p267
      $region42: #{tpu_custom_call.1} parent=5 // pred_check_branch
        %270 = sbr.rel (%p268) target = $region44
      $region43: #{tpu_custom_call.1} parent=5 // pred_region
        %s271 = ssub.s32 %s15, 2
        // Predicated region
        $region45: #{tpu_custom_call.1} parent=43 // pred_check
          %p272 = pneg %p91
        $region46: #{tpu_custom_call.1} parent=43 // pred_check_branch
          %274 = sbr.rel (%p272) target = $region48
        $region47: #{tpu_custom_call.1} parent=43 // pred_region
          %s275 = sand.u32 %s76, 1
          %s276 = scalar_lea.sflag [#allocation4], %s275
          %s277 = sand.u32 %s76, 1
          %s278 = smul.addr %s277, 2
          %s279 = scalar_lea.vmem [#allocation7], %s278
          %280 = dma.done %s276, 32
        $region48: #{tpu_custom_call.1} parent=43 // pred_fallthru
          _
      $region44: #{tpu_custom_call.1} parent=5 // pred_fallthru
        _
    $region6: #{tpu_custom_call.1} parent=1 // loop_footer
      %s19 = sadd.s32 1, %s15
    $region7: #{tpu_custom_call.1} parent=1 // loop_footer_branch
      %14 = sbr.rel target = $region3
    $region8: #{tpu_custom_call.1} parent=1 // loop_exit
      _
    %281 = vsyncpa [#allocation3], 1
    %s282 = scalar_lea.sflag [#allocation3], 1
    %283 = vsyncpa %s282, 1
    %284 = vsyncpa [#allocation4], 1
    %s285 = scalar_lea.sflag [#allocation4], 1
    %286 = vsyncpa %s285, 1
    %287 = vsyncpa [#allocation5], 1
    %s288 = scalar_lea.sflag [#allocation5], 1
    %289 = vsyncpa %s288, 1

</llo_original>
